<compile_context>
chip_gen: v7x
topology: tpu7x:2x2x1
jax: 0.10.0
libtpu: 0.0.40
codegen_flags: <defaults>
</compile_context>

<pallas_src>
import functools

import jax
import jax.numpy as jnp
from jax import lax
from jax.experimental import pallas as pl
from jax.experimental.pallas import tpu as pltpu


def _gce_kernel(q, logits_ref, targets_ref, loss_ref):
    z = logits_ref[...]                       # (TILE_N, C), native dtype (bf16/f32)
    t = targets_ref[...]                      # (TILE_N, 1) int32

    # Row max in native dtype (exact; half-width vregs for bf16 on v6e/v7x).
    m = jnp.max(z, axis=-1, keepdims=True)    # (TILE_N, 1)
    m32 = m.astype(jnp.float32)

    # Gather z[i, targets[i]] via a (1, C) iota broadcast against t (no full
    # (TILE_N, C) int32 tile).  The row sum has exactly one non-zero, so the
    # native-dtype sum is exact; shift to f32 afterwards (also exact).
    # TODO(synk): out-of-range targets (e.g. ignore_index=-100) select nothing
    #             and yield a finite 0-based loss instead of an error.
    col = lax.broadcasted_iota(jnp.int32, (1, z.shape[-1]), 1)
    z_t = jnp.sum(jnp.where(col == t, z, 0), axis=-1, keepdims=True)
    z_t32 = z_t.astype(jnp.float32) - m32                         # (TILE_N, 1)

    # Stable log-sum-exp: single f32 upcast of the shifted tile (exact from
    # bf16), exp on the EUP, cross-lane sum on the XLU.
    zc32 = z.astype(jnp.float32) - m32                            # (TILE_N, C)
    lse = jnp.log(jnp.sum(jnp.exp(zc32), axis=-1, keepdims=True))  # (TILE_N, 1)

    log_p_t = z_t32 - lse                      # log_softmax at the target class
    weight = jnp.exp(q * log_p_t) * q          # Yg**q * q, underflow-safe
    # TODO(synk): weight is .detach()'d in PyTorch; a custom_vjp treating it as
    #             a constant is required for matching training gradients
    #             (forward matches).
    loss_ref[...] = (-log_p_t * weight).astype(loss_ref.dtype)


def _pick_tile_n(n, c, itemsize, block_budget_bytes=2 * 1024 * 1024):
    """Largest row tile whose logits block stays ~<=2 MiB (roofline already
    saturates there); double-buffered I/O + f32 intermediates then fit easily
    inside every generation's VMEM."""
    max_rows = max(8, block_budget_bytes // max(1, c * itemsize))
    tile = min(1024, max_rows)
    tile = max(8, (tile // 8) * 8)             # sublane multiple
    n_pad8 = ((n + 7) // 8) * 8
    return min(tile, max(8, n_pad8))


@functools.partial(jax.jit, static_argnames=("q", "tile_n"))
def generalized_ce_loss(logits, targets, q=0.6, tile_n=None):
    """logits: (N, C) float (f32 or bf16); targets: (N,) int. Returns (N,) f32."""
    n, c = logits.shape
    itemsize = jnp.dtype(logits.dtype).itemsize
    if tile_n is None:
        tile_n = _pick_tile_n(n, c, itemsize)
    tile_n = max(8, (int(tile_n) // 8) * 8)

    targets2d = targets.astype(jnp.int32).reshape(n, 1)

    # VMEM accounting: double-buffered I/O + ~3x f32 intermediates in the body.
    io_bytes = tile_n * (c * itemsize + 4 + 4)
    inter_bytes = 3 * tile_n * c * 4
    needed = 2 * io_bytes + inter_bytes + (1 << 20)
    vmem_limit = int(min(48 * 1024 * 1024, max(32 * 1024 * 1024, needed)))

    out = pl.pallas_call(
        functools.partial(_gce_kernel, q),
        out_shape=jax.ShapeDtypeStruct((n, 1), jnp.float32),
        grid=(pl.cdiv(n, tile_n),),            # partial last block handled by Pallas
        in_specs=[
            pl.BlockSpec((tile_n, c), lambda i: (i, 0)),
            pl.BlockSpec((tile_n, 1), lambda i: (i, 0)),
        ],
        out_specs=pl.BlockSpec((tile_n, 1), lambda i: (i, 0)),
        compiler_params=pltpu.CompilerParams(
            dimension_semantics=("parallel",),  # megacore split on v7x
            vmem_limit_bytes=vmem_limit,
        ),
        cost_estimate=pl.CostEstimate(
            flops=5 * n * c,
            transcendentals=n * c + 2 * n,
            bytes_accessed=n * c * itemsize + 8 * n,
        ),
    )(logits, targets2d)                        # logits streamed in native dtype
    return out[:, 0]

    # TODO(synk): PyTorch's host-side NaN check / NameError raise has no
    #             in-kernel equivalent; it is a sanity check, not math.


def _reference(logits, targets, q=0.6):
    logp = jax.nn.log_softmax(logits.astype(jnp.float32), axis=1)
    log_p_t = jnp.take_along_axis(logp, targets[:, None], axis=1)[:, 0]
    return (-log_p_t) * (jnp.exp(log_p_t) ** q) * q


if __name__ == "__main__":
    key = jax.random.PRNGKey(0)
    k1, k2, k3, k4 = jax.random.split(key, 4)

    # Case 1: small f32, row count a multiple of 8 (single full block).
    N, C = 8, 32
    logits = jax.random.normal(k1, (N, C), dtype=jnp.float32)
    targets = jax.random.randint(k2, (N,), 0, C, dtype=jnp.int32)
    loss = generalized_ce_loss(logits, targets, q=0.6)
    jax.block_until_ready(loss)
    ref = _reference(logits, targets, q=0.6)
    assert loss.shape == (N,)
    assert jnp.allclose(loss, ref, atol=1e-5, rtol=1e-5), (loss, ref)

    # Case 2: ragged row count (partial last block, no host-side padding).
    N2, C2 = 13, 32
    logits2 = jax.random.normal(k3, (N2, C2), dtype=jnp.float32)
    targets2 = jax.random.randint(k4, (N2,), 0, C2, dtype=jnp.int32)
    loss2 = generalized_ce_loss(logits2, targets2, q=0.6)
    jax.block_until_ready(loss2)
    ref2 = _reference(logits2, targets2, q=0.6)
    assert loss2.shape == (N2,)
    assert jnp.allclose(loss2, ref2, atol=1e-5, rtol=1e-5), (loss2, ref2)

    # Case 3: multi-step grid with a partial last block (tile_n override).
    N3, C3 = 20, 32
    logits3 = jax.random.normal(k1, (N3, C3), dtype=jnp.float32)
    targets3 = jax.random.randint(k2, (N3,), 0, C3, dtype=jnp.int32)
    loss3 = generalized_ce_loss(logits3, targets3, q=0.6, tile_n=8)
    jax.block_until_ready(loss3)
    ref3 = _reference(logits3, targets3, q=0.6)
    assert loss3.shape == (N3,)
    assert jnp.allclose(loss3, ref3, atol=1e-5, rtol=1e-5), (loss3, ref3)

    # Case 4: bf16 logits streamed natively; shift/LSE done from one f32 upcast.
    logits_bf16 = logits.astype(jnp.bfloat16)
    loss4 = generalized_ce_loss(logits_bf16, targets, q=0.6)
    jax.block_until_ready(loss4)
    ref4 = _reference(logits_bf16, targets, q=0.6)
    assert jnp.all(jnp.isfinite(loss4))
    assert jnp.allclose(loss4, ref4, atol=1e-3, rtol=1e-3), (loss4, ref4)

    print("KERNEL_OK")
</pallas_src>

<mosaic_0001>
module attributes {stable_mosaic.version = 11 : i64} {
  func.func @_gce_kernel(%arg0: i32, %arg1: memref<8x32xf32, #tpu.memory_space<vmem>>, %arg2: memref<8x1xi32, #tpu.memory_space<vmem>>, %arg3: memref<8x1xf32, #tpu.memory_space<vmem>>) attributes {dimension_semantics = [#tpu.dimension_semantics<parallel>], iteration_bounds = array<i64: 1>, scalar_prefetch = 0 : i64, scratch_operands = 0 : i64, tpu.core_type = #tpu.core_type<tc>, window_params = [{transform_indices = @transform_0, window_bounds = array<i64: 8, 32>}, {transform_indices = @transform_1, window_bounds = array<i64: 8, 1>}, {transform_indices = @transform_2, window_bounds = array<i64: 8, 1>}]} {
    %c0 = arith.constant 0 : index
    %c0_0 = arith.constant 0 : index
    %0 = vector.load %arg1[%c0, %c0_0] : memref<8x32xf32, #tpu.memory_space<vmem>>, vector<8x32xf32>
    %c0_1 = arith.constant 0 : index
    %c0_2 = arith.constant 0 : index
    %1 = vector.load %arg2[%c0_1, %c0_2] : memref<8x1xi32, #tpu.memory_space<vmem>>, vector<8x1xi32>
    %cst = arith.constant dense<0xFF800000> : vector<8xf32>
    %2 = vector.multi_reduction <maximumf>, %0, %cst [1] : vector<8x32xf32> to vector<8xf32>
    %3 = vector.shape_cast %2 : vector<8xf32> to vector<8x1xf32>
    %4 = tpu.iota {dimensions = array<i32: 1>} : vector<1x32xi32>
    %5 = vector.broadcast %4 : vector<1x32xi32> to vector<8x32xi32>
    %6 = vector.broadcast %1 : vector<8x1xi32> to vector<8x32xi32>
    %7 = arith.cmpi eq, %5, %6 : vector<8x32xi32>
    %c0_i32 = arith.constant 0 : i32
    %8 = arith.sitofp %c0_i32 : i32 to f32
    %9 = vector.broadcast %8 : f32 to vector<8x32xf32>
    %10 = arith.select %7, %0, %9 : vector<8x32xi1>, vector<8x32xf32>
    %cst_3 = arith.constant dense<0.000000e+00> : vector<8xf32>
    %11 = vector.multi_reduction <add>, %10, %cst_3 [1] : vector<8x32xf32> to vector<8xf32>
    %12 = vector.shape_cast %11 : vector<8xf32> to vector<8x1xf32>
    %13 = arith.subf %12, %3 : vector<8x1xf32>
    %14 = vector.broadcast %3 : vector<8x1xf32> to vector<8x32xf32>
    %15 = arith.subf %0, %14 : vector<8x32xf32>
    %16 = math.exp %15 : vector<8x32xf32>
    %cst_4 = arith.constant dense<0.000000e+00> : vector<8xf32>
    %17 = vector.multi_reduction <add>, %16, %cst_4 [1] : vector<8x32xf32> to vector<8xf32>
    %18 = vector.shape_cast %17 : vector<8xf32> to vector<8x1xf32>
    %19 = math.log %18 : vector<8x1xf32>
    %20 = arith.subf %13, %19 : vector<8x1xf32>
    %cst_5 = arith.constant 6.000000e-01 : f32
    %21 = vector.broadcast %cst_5 : f32 to vector<8x1xf32>
    %22 = arith.mulf %21, %20 : vector<8x1xf32>
    %23 = math.exp %22 : vector<8x1xf32>
    %cst_6 = arith.constant 6.000000e-01 : f32
    %24 = vector.broadcast %cst_6 : f32 to vector<8x1xf32>
    %25 = arith.mulf %23, %24 : vector<8x1xf32>
    %cst_7 = arith.constant 0.000000e+00 : f32
    %26 = vector.broadcast %cst_7 : f32 to vector<8x1xf32>
    %27 = arith.subf %26, %20 : vector<8x1xf32>
    %28 = arith.mulf %27, %25 : vector<8x1xf32>
    %c0_8 = arith.constant 0 : index
    %c0_9 = arith.constant 0 : index
    %29 = vector.load %arg3[%c0_8, %c0_9] : memref<8x1xf32, #tpu.memory_space<vmem>>, vector<8x1xf32>
    tpu.vector_store %arg3[%c0_8, %c0_9], %28 {strides = array<i32>} : memref<8x1xf32, #tpu.memory_space<vmem>>, vector<8x1xf32>,
    return
  }
  func.func @transform_0(%arg0: i32) -> (i32, i32) {
    %c0_i32 = arith.constant 0 : i32
    %c0_i32_0 = arith.constant 0 : i32
    return %arg0, %c0_i32 : i32, i32
  }
  func.func @transform_1(%arg0: i32) -> (i32, i32) {
    %c0_i32 = arith.constant 0 : i32
    %c0_i32_0 = arith.constant 0 : i32
    return %arg0, %c0_i32 : i32, i32
  }
  func.func @transform_2(%arg0: i32) -> (i32, i32) {
    %c0_i32 = arith.constant 0 : i32
    %c0_i32_0 = arith.constant 0 : i32
    return %arg0, %c0_i32 : i32, i32
  }
}

</mosaic_0001>

<llo_original>
// kernel: generalized_ce_loss.1
$region0: #{generalized_ce_loss.1}
  #allocation0 [shape = 'u32[]', space=smem, size = 0x4, offset = 0x4, fixed_abs, tag = 'smem constant byte address 0x4 - core index']
  #allocation1 [shape = 'u32[144,128]{1,0:T(1,128)}', space=vmem, size = 0x12000, scoped, tag = 'internal scratch']
  %s0 = inlined_call_operand.vmem [shape: f32[8,32], index: 0, kind: input, shape index: {}]
  %s1 = inlined_call_operand.vmem [shape: s32[8,1], index: 1, kind: input, shape index: {}]
  %s2 = inlined_call_operand.vmem [shape: f32[8,1], index: 2, kind: output, shape index: {}]
  %s3 = sld [smem:[#allocation0]]
  $region18: #{generalized_ce_loss.1} parent=0
    _
  %s5 = ssub.s32 1, %s3
  %s6 = scalar_select 0, %s5, %s3
  // Predicated region
  $region2: #{generalized_ce_loss.1} parent=0 // pred_check
    _
  $region3: #{generalized_ce_loss.1} parent=0 // pred_check_branch
    %8 = sbr.rel (0) target = $region5
  $region4: #{generalized_ce_loss.1} parent=0 // pred_region
    _
  $region5: #{generalized_ce_loss.1} parent=0 // pred_fallthru
    _
  // Predicated region
  $region6: #{generalized_ce_loss.1} parent=0 // pred_check
    _
  $region7: #{generalized_ce_loss.1} parent=0 // pred_check_branch
    %10 = sbr.rel (0) target = $region9
  $region8: #{generalized_ce_loss.1} parent=0 // pred_region
    _
  $region9: #{generalized_ce_loss.1} parent=0 // pred_fallthru
    _
  %v11 = vld [vmem:[%s0] sm:$0xff]
  %v12 = vld [vmem:[%s1] sm:$0xff]
  %vm13 = vcmask 261120
  %v14 = vsel %vm13, %v11, -inf
  %15 = vmax.xlane.f32.xlu0 %v14
  %v16 = vpop.xlane.xlu0 %15
  %v17 = vlaneseq
  %v18 = vand.u32 %v17, 127
  %19 = vset.pattern.permute.xlu0 0
  %20 = vperm.xlu0 %19, %v12
  %v21 = vpop.permute.xlu0 %20
  %vm22 = vcmp.eq.s32.totalorder %v18, %v21
  %v23 = vsel %vm22, %v11, 0.0
  %v24 = vsel %vm13, %v23, 0.0
  %25 = vadd.xlane.f32.xlu0 %v24
  %v26 = vpop.xlane.xlu0 %25
  %v27 = vsub.f32 %v26, %v16
  %v28 = vsub.f32 %v11, %v16
  %v29 = vmul.f32 %v28, 1.442695
  %v30 = vpow.pop %v29
  %v31 = vsel %vm13, %v30, 0.0
  %32 = vadd.xlane.f32.xlu0 %v31
  %v33 = vpop.xlane.xlu0 %32
  %v34 = vlog2.pop %v33
  %v35 = vmul.f32 %v34, 0.6931472
  %v36 = vsub.f32 %v27, %v35
  %v37 = vmul.f32 %v36, 0.6
  %v38 = vmul.f32 %v37, 1.442695
  %v39 = vpow.pop %v38
  %v40 = vmul.f32 %v39, 0.6
  %v41 = vsub.f32 0.0, %v36
  %v42 = vmul.f32 %v41, %v40
  %vm43 = vcmask 7168
  %44 = vst.msk [vmem:[%s2] sm:$0xff] %vm43, %v42
  // Predicated region
  $region10: #{generalized_ce_loss.1} parent=0 // pred_check
    _
  $region11: #{generalized_ce_loss.1} parent=0 // pred_check_branch
    %46 = sbr.rel (0) target = $region13
  $region12: #{generalized_ce_loss.1} parent=0 // pred_region
    _
  $region13: #{generalized_ce_loss.1} parent=0 // pred_fallthru
    _
  // Predicated region
  $region14: #{generalized_ce_loss.1} parent=0 // pred_check
    _
  $region15: #{generalized_ce_loss.1} parent=0 // pred_check_branch
    %48 = sbr.rel (0) target = $region17
  $region16: #{generalized_ce_loss.1} parent=0 // pred_region
    _
  $region17: #{generalized_ce_loss.1} parent=0 // pred_fallthru
    _

</llo_original>
